<compile_context>
chip_gen: v5e
topology: v5e:2x2
jax: 0.10.0
libtpu: 0.0.40
codegen_flags: <defaults>
</compile_context>

<pallas_src>
import functools
import math

import jax
import jax.numpy as jnp
from jax.experimental import pallas as pl
from jax.experimental.pallas import tpu as pltpu

P = 128  # lane-dense feature width used for the in-kernel working tile


def _softplus(x):
    # torch.nn.Softplus(beta=1, threshold=20).  The non-selected exp branch
    # can become inf (never NaN), so forward values are exact.
    # TODO(synk): use the nested-where trick if this is ever differentiated.
    return jnp.where(x > 20.0, x, jnp.log1p(jnp.exp(x)))


def _round_up(x, m):
    return ((x + m - 1) // m) * m


def odenet_kernel(tc_ref, y_ref, w_ref, b_ref, g_ref, out_ref, x_pad_ref, *,
                  n_layers, out_dim):
    """One batch tile of the whole ConcatSquashLinear stack.

    tc_ref : (TB, DC)         narrow time-context; lane `dim_c` carries 1.0
    y_ref  : (TB, y_dim)      narrow state
    w_ref  : (L, P, P)        per-layer x-path weights (zero padded)
    b_ref  : (L, 1, P)        per-layer x-path biases
    g_ref  : (DC, 2*L*P)      [Wg_0..Wg_{L-1} | Wb_0..Wb_{L-1}]; bg folded
                              into the ones-lane row of each Wg block
    x_pad_ref : (TB, P) VMEM  128-lane working tile for the state
    """
    y_dim = y_ref.shape[-1]

    # Zero-extend the narrow state to a lane-dense working tile in VMEM.
    # Padded lanes beyond each layer's real d_out stay harmless because the
    # packed W rows/columns outside the real dims are exactly zero.
    x_pad_ref[...] = jnp.zeros_like(x_pad_ref)
    x_pad_ref[:, :y_dim] = y_ref[...]
    x = x_pad_ref[...]

    # Single fused MXU pass for every layer's gate/shift path (tc is
    # loop-invariant), K = dim_c+1 rows only.  All sigmoids issued at once so
    # the EUP work overlaps the first x @ W matmul.
    tg = jnp.dot(tc_ref[...], g_ref[...], preferred_element_type=jnp.float32)
    gates = jax.nn.sigmoid(tg[:, :n_layers * P])

    for l in range(n_layers):
        h = jnp.dot(x, w_ref[l], preferred_element_type=jnp.float32) + b_ref[l]
        hb = tg[:, (n_layers + l) * P:(n_layers + l + 1) * P]
        x = h * gates[:, l * P:(l + 1) * P] + hb
        if l < n_layers - 1:
            x = _softplus(x)

    # Narrow (masked) store: tiny vs. the 16x HBM traffic of a padded output.
    out_ref[...] = x[:, :out_dim].astype(out_ref.dtype)


def make_odenet_params(key, input_dim, hidden_dims, dim_c):
    """Deterministic init mimicking nn.Linear (uniform +/- 1/sqrt(fan_in))."""
    dims = (input_dim,) + tuple(hidden_dims) + (input_dim,)
    params = []
    for l in range(len(dims) - 1):
        d_in, d_out = dims[l], dims[l + 1]
        k_w, k_b, k_wg, k_bg, k_wb, key = jax.random.split(key, 6)
        bound = 1.0 / math.sqrt(d_in)
        bound_c = 1.0 / math.sqrt(dim_c)
        W = jax.random.uniform(k_w, (d_in, d_out), jnp.float32, -bound, bound)
        b = jax.random.uniform(k_b, (d_out,), jnp.float32, -bound, bound)
        Wg = jax.random.uniform(k_wg, (dim_c, d_out), jnp.float32, -bound_c, bound_c)
        bg = jax.random.uniform(k_bg, (d_out,), jnp.float32, -bound_c, bound_c)
        Wb = jax.random.uniform(k_wb, (dim_c, d_out), jnp.float32, -bound_c, bound_c)
        params.append((W, b, Wg, bg, Wb))
    return params


def pack_odenet_params(params, dim_c):
    """Pack per-layer (W, b, Wg, bg, Wb) into three small f32 slabs."""
    n_layers = len(params)
    dc_pad = _round_up(dim_c + 1, 8)       # sublane-aligned contracting dim
    w_all = jnp.zeros((n_layers, P, P), jnp.float32)
    b_all = jnp.zeros((n_layers, 1, P), jnp.float32)
    g_all = jnp.zeros((dc_pad, 2 * n_layers * P), jnp.float32)
    for l, (W, b, Wg, bg, Wb) in enumerate(params):
        d_in, d_out = W.shape
        assert d_in <= P and d_out <= P
        w_all = w_all.at[l, :d_in, :d_out].set(W)
        b_all = b_all.at[l, 0, :d_out].set(b)
        # gate blocks first, shift blocks second; bg folded via the ones lane
        g_all = g_all.at[:dim_c, l * P:l * P + d_out].set(Wg)
        g_all = g_all.at[dim_c, l * P:l * P + d_out].set(bg)
        g_all = g_all.at[:dim_c, (n_layers + l) * P:(n_layers + l) * P + d_out].set(Wb)
    return w_all, b_all, g_all


def _choose_tiling(batch, batch_tile):
    """Large tiles to amortize per-step overhead; >=2 equal steps for v7x."""
    b8 = _round_up(batch, 8)
    if b8 <= 8:
        return b8, b8                       # tiny batch: single grid step
    tb = min(batch_tile, _round_up(-(-b8 // 2), 8))  # guarantees >= 2 steps
    b_pad = _round_up(b8, tb)
    return tb, b_pad


@functools.partial(
    jax.jit, static_argnames=("out_dim", "dim_c", "n_layers", "batch_tile"))
def odenet_forward(tc, y, w_all, b_all, g_all, *, out_dim, dim_c, n_layers,
                   batch_tile=1024):
    batch, y_dim = y.shape
    dc_pad = g_all.shape[0]
    tb, b_pad = _choose_tiling(batch, batch_tile)

    # Narrow inputs: append the ones lane (folded gate bias) to tc; only pad
    # the batch dimension (to the tile size), never the feature dimension.
    tc_in = jnp.zeros((b_pad, dc_pad), jnp.float32)
    tc_in = tc_in.at[:batch, :dim_c].set(tc.astype(jnp.float32))
    tc_in = tc_in.at[:batch, dim_c].set(1.0)    # ones lane on real rows only
    y_in = y.astype(jnp.float32)
    if b_pad != batch:
        y_in = jnp.zeros((b_pad, y_dim), jnp.float32).at[:batch].set(y_in)

    kernel = functools.partial(odenet_kernel, n_layers=n_layers, out_dim=out_dim)
    out = pl.pallas_call(
        kernel,
        out_shape=jax.ShapeDtypeStruct((b_pad, out_dim), jnp.float32),
        grid_spec=pltpu.PrefetchScalarGridSpec(
            num_scalar_prefetch=0,
            grid=(b_pad // tb,),
            in_specs=[
                pl.BlockSpec((tb, dc_pad), lambda i: (i, 0)),               # tc
                pl.BlockSpec((tb, y_dim), lambda i: (i, 0)),                # y
                pl.BlockSpec((n_layers, P, P), lambda i: (0, 0, 0)),        # W slab
                pl.BlockSpec((n_layers, 1, P), lambda i: (0, 0, 0)),        # b slab
                pl.BlockSpec((dc_pad, 2 * n_layers * P), lambda i: (0, 0)), # tc-path slab
            ],
            out_specs=pl.BlockSpec((tb, out_dim), lambda i: (i, 0)),
            scratch_shapes=[pltpu.VMEM((tb, P), jnp.float32)],
        ),
        compiler_params=pltpu.CompilerParams(
            dimension_semantics=("parallel",)),  # shards steps across v7x's 2 TCs
    )(tc_in, y_in, w_all, b_all, g_all)
    return out[:batch]


def odenet_reference(tc, y, params):
    """Pure-JAX reference of the same forward pass, for validation."""
    n_layers = len(params)
    x = y
    for l, (W, b, Wg, bg, Wb) in enumerate(params):
        h = x @ W + b
        gate = jax.nn.sigmoid(tc @ Wg + bg)
        hb = tc @ Wb
        x = h * gate + hb
        if l < n_layers - 1:
            x = _softplus(x)
    return x


if __name__ == "__main__":
    # Shapes consistent with the module: input_shape=(input_dim,),
    # hidden_dims=(32, 32), dim_c=7 (default).
    batch, input_dim, dim_c = 8, 8, 7
    hidden_dims = (32, 32)

    key = jax.random.PRNGKey(0)
    k_tc, k_y, k_p, k_tc2, k_y2 = jax.random.split(key, 5)
    params = make_odenet_params(k_p, input_dim, hidden_dims, dim_c)
    w_all, b_all, g_all = pack_odenet_params(params, dim_c)
    n_layers = len(params)

    # Small demo batch (single grid step).
    tc = jax.random.normal(k_tc, (batch, dim_c), jnp.float32)
    y = jax.random.normal(k_y, (batch, input_dim), jnp.float32)
    out = odenet_forward(tc, y, w_all, b_all, g_all,
                         out_dim=input_dim, dim_c=dim_c, n_layers=n_layers)
    out = jax.block_until_ready(out)
    ref = odenet_reference(tc, y, params)
    assert out.shape == (batch, input_dim)
    assert jnp.allclose(out, ref, atol=1e-5, rtol=1e-5), "mismatch vs reference"

    # Larger batch exercising the 2-step parallel batch grid (dual-TC on v7x).
    big = 512
    tc2 = jax.random.normal(k_tc2, (big, dim_c), jnp.float32)
    y2 = jax.random.normal(k_y2, (big, input_dim), jnp.float32)
    out2 = jax.block_until_ready(
        odenet_forward(tc2, y2, w_all, b_all, g_all,
                       out_dim=input_dim, dim_c=dim_c, n_layers=n_layers))
    ref2 = odenet_reference(tc2, y2, params)
    assert out2.shape == (big, input_dim)
    assert jnp.allclose(out2, ref2, atol=1e-5, rtol=1e-5), "batched mismatch"

    print("KERNEL_OK")
</pallas_src>

<mosaic_0001>
module attributes {stable_mosaic.version = 11 : i64} {
  func.func @odenet_kernel(%arg0: i32, %arg1: memref<8x8xf32, #tpu.memory_space<vmem>>, %arg2: memref<8x8xf32, #tpu.memory_space<vmem>>, %arg3: memref<3x128x128xf32, #tpu.memory_space<vmem>>, %arg4: memref<3x1x128xf32, #tpu.memory_space<vmem>>, %arg5: memref<8x768xf32, #tpu.memory_space<vmem>>, %arg6: memref<8x8xf32, #tpu.memory_space<vmem>>, %arg7: memref<8x128xf32, #tpu.memory_space<vmem>>) attributes {dimension_semantics = [#tpu.dimension_semantics<parallel>], iteration_bounds = array<i64: 1>, scalar_prefetch = 0 : i64, scratch_operands = 1 : i64, tpu.core_type = #tpu.core_type<tc>, window_params = [{transform_indices = @transform_0, window_bounds = array<i64: 8, 8>}, {transform_indices = @transform_1, window_bounds = array<i64: 8, 8>}, {pipeline_mode = #tpu.pipeline_mode<synchronous>, transform_indices = @transform_2, window_bounds = array<i64: 3, 128, 128>}, {pipeline_mode = #tpu.pipeline_mode<synchronous>, transform_indices = @transform_3, window_bounds = array<i64: 3, 1, 128>}, {pipeline_mode = #tpu.pipeline_mode<synchronous>, transform_indices = @transform_4, window_bounds = array<i64: 8, 768>}, {transform_indices = @transform_5, window_bounds = array<i64: 8, 8>}]} {
    %cst = arith.constant 0.000000e+00 : f32
    %0 = vector.broadcast %cst : f32 to vector<8x128xf32>
    %c0 = arith.constant 0 : index
    %c0_0 = arith.constant 0 : index
    %1 = vector.load %arg7[%c0, %c0_0] : memref<8x128xf32, #tpu.memory_space<vmem>>, vector<8x128xf32>
    tpu.vector_store %arg7[%c0, %c0_0], %0 {strides = array<i32>} : memref<8x128xf32, #tpu.memory_space<vmem>>, vector<8x128xf32>,
    %c0_1 = arith.constant 0 : index
    %c0_2 = arith.constant 0 : index
    %2 = vector.load %arg2[%c0_1, %c0_2] : memref<8x8xf32, #tpu.memory_space<vmem>>, vector<8x8xf32>
    %c0_3 = arith.constant 0 : index
    %c0_4 = arith.constant 0 : index
    %3 = vector.load %arg7[%c0_3, %c0_4] : memref<8x128xf32, #tpu.memory_space<vmem>>, vector<8x8xf32>
    tpu.vector_store %arg7[%c0_3, %c0_4], %2 {strides = array<i32>} : memref<8x128xf32, #tpu.memory_space<vmem>>, vector<8x8xf32>,
    %c0_5 = arith.constant 0 : index
    %c0_6 = arith.constant 0 : index
    %4 = vector.load %arg7[%c0_5, %c0_6] : memref<8x128xf32, #tpu.memory_space<vmem>>, vector<8x128xf32>
    %c0_7 = arith.constant 0 : index
    %c0_8 = arith.constant 0 : index
    %5 = vector.load %arg1[%c0_7, %c0_8] : memref<8x8xf32, #tpu.memory_space<vmem>>, vector<8x8xf32>
    %c0_9 = arith.constant 0 : index
    %c0_10 = arith.constant 0 : index
    %6 = vector.load %arg5[%c0_9, %c0_10] : memref<8x768xf32, #tpu.memory_space<vmem>>, vector<8x768xf32>
    %cst_11 = arith.constant dense<0.000000e+00> : vector<8x768xf32>
    %7 = tpu.matmul %5, %6, %cst_11 {dimension_numbers = #tpu.dot_dimension_numbers<[1], [0], [0], [1], [0, 0, 1, 1], [], []>} : vector<8x8xf32>, vector<8x768xf32>, vector<8x768xf32> -> vector<8x768xf32>
    %8 = vector.extract_strided_slice %7 {offsets = [0, 0], sizes = [8, 384], strides = [1, 1]} : vector<8x768xf32> to vector<8x384xf32>
    %9 = arith.negf %8 : vector<8x384xf32>
    %10 = math.exp %9 : vector<8x384xf32>
    %cst_12 = arith.constant 1.000000e+00 : f32
    %11 = vector.broadcast %cst_12 : f32 to vector<8x384xf32>
    %12 = arith.addf %11, %10 : vector<8x384xf32>
    %13 = arith.divf %11, %12 : vector<8x384xf32>
    %c0_13 = arith.constant 0 : index
    %c0_14 = arith.constant 0 : index
    %c0_15 = arith.constant 0 : index
    %14 = vector.load %arg3[%c0_13, %c0_14, %c0_15] : memref<3x128x128xf32, #tpu.memory_space<vmem>>, vector<1x128x128xf32>
    %15 = vector.shape_cast %14 : vector<1x128x128xf32> to vector<128x128xf32>
    %cst_16 = arith.constant dense<0.000000e+00> : vector<8x128xf32>
    %16 = tpu.matmul %4, %15, %cst_16 {dimension_numbers = #tpu.dot_dimension_numbers<[1], [0], [0], [1], [0, 0, 1, 1], [], []>} : vector<8x128xf32>, vector<128x128xf32>, vector<8x128xf32> -> vector<8x128xf32>
    %c0_17 = arith.constant 0 : index
    %c0_18 = arith.constant 0 : index
    %c0_19 = arith.constant 0 : index
    %17 = vector.load %arg4[%c0_17, %c0_18, %c0_19] : memref<3x1x128xf32, #tpu.memory_space<vmem>>, vector<1x1x128xf32>
    %18 = vector.shape_cast %17 : vector<1x1x128xf32> to vector<1x128xf32>
    %19 = vector.broadcast %18 : vector<1x128xf32> to vector<8x128xf32>
    %20 = arith.addf %16, %19 : vector<8x128xf32>
    %21 = vector.extract_strided_slice %7 {offsets = [0, 384], sizes = [8, 128], strides = [1, 1]} : vector<8x768xf32> to vector<8x128xf32>
    %22 = vector.extract_strided_slice %13 {offsets = [0, 0], sizes = [8, 128], strides = [1, 1]} : vector<8x384xf32> to vector<8x128xf32>
    %23 = arith.mulf %20, %22 : vector<8x128xf32>
    %24 = arith.addf %23, %21 : vector<8x128xf32>
    %cst_20 = arith.constant 2.000000e+01 : f32
    %25 = vector.broadcast %cst_20 : f32 to vector<8x128xf32>
    %26 = arith.cmpf ogt, %24, %25 : vector<8x128xf32>
    %27 = math.exp %24 : vector<8x128xf32>
    %28 = math.log1p %27 : vector<8x128xf32>
    %29 = arith.select %26, %24, %28 : vector<8x128xi1>, vector<8x128xf32>
    %c1 = arith.constant 1 : index
    %c0_21 = arith.constant 0 : index
    %c0_22 = arith.constant 0 : index
    %30 = vector.load %arg3[%c1, %c0_21, %c0_22] : memref<3x128x128xf32, #tpu.memory_space<vmem>>, vector<1x128x128xf32>
    %31 = vector.shape_cast %30 : vector<1x128x128xf32> to vector<128x128xf32>
    %cst_23 = arith.constant dense<0.000000e+00> : vector<8x128xf32>
    %32 = tpu.matmul %29, %31, %cst_23 {dimension_numbers = #tpu.dot_dimension_numbers<[1], [0], [0], [1], [0, 0, 1, 1], [], []>} : vector<8x128xf32>, vector<128x128xf32>, vector<8x128xf32> -> vector<8x128xf32>
    %c1_24 = arith.constant 1 : index
    %c0_25 = arith.constant 0 : index
    %c0_26 = arith.constant 0 : index
    %33 = vector.load %arg4[%c1_24, %c0_25, %c0_26] : memref<3x1x128xf32, #tpu.memory_space<vmem>>, vector<1x1x128xf32>
    %34 = vector.shape_cast %33 : vector<1x1x128xf32> to vector<1x128xf32>
    %35 = vector.broadcast %34 : vector<1x128xf32> to vector<8x128xf32>
    %36 = arith.addf %32, %35 : vector<8x128xf32>
    %37 = vector.extract_strided_slice %7 {offsets = [0, 512], sizes = [8, 128], strides = [1, 1]} : vector<8x768xf32> to vector<8x128xf32>
    %38 = vector.extract_strided_slice %13 {offsets = [0, 128], sizes = [8, 128], strides = [1, 1]} : vector<8x384xf32> to vector<8x128xf32>
    %39 = arith.mulf %36, %38 : vector<8x128xf32>
    %40 = arith.addf %39, %37 : vector<8x128xf32>
    %cst_27 = arith.constant 2.000000e+01 : f32
    %41 = vector.broadcast %cst_27 : f32 to vector<8x128xf32>
    %42 = arith.cmpf ogt, %40, %41 : vector<8x128xf32>
    %43 = math.exp %40 : vector<8x128xf32>
    %44 = math.log1p %43 : vector<8x128xf32>
    %45 = arith.select %42, %40, %44 : vector<8x128xi1>, vector<8x128xf32>
    %c2 = arith.constant 2 : index
    %c0_28 = arith.constant 0 : index
    %c0_29 = arith.constant 0 : index
    %46 = vector.load %arg3[%c2, %c0_28, %c0_29] : memref<3x128x128xf32, #tpu.memory_space<vmem>>, vector<1x128x128xf32>
    %47 = vector.shape_cast %46 : vector<1x128x128xf32> to vector<128x128xf32>
    %cst_30 = arith.constant dense<0.000000e+00> : vector<8x128xf32>
    %48 = tpu.matmul %45, %47, %cst_30 {dimension_numbers = #tpu.dot_dimension_numbers<[1], [0], [0], [1], [0, 0, 1, 1], [], []>} : vector<8x128xf32>, vector<128x128xf32>, vector<8x128xf32> -> vector<8x128xf32>
    %c2_31 = arith.constant 2 : index
    %c0_32 = arith.constant 0 : index
    %c0_33 = arith.constant 0 : index
    %49 = vector.load %arg4[%c2_31, %c0_32, %c0_33] : memref<3x1x128xf32, #tpu.memory_space<vmem>>, vector<1x1x128xf32>
    %50 = vector.shape_cast %49 : vector<1x1x128xf32> to vector<1x128xf32>
    %51 = vector.broadcast %50 : vector<1x128xf32> to vector<8x128xf32>
    %52 = arith.addf %48, %51 : vector<8x128xf32>
    %53 = vector.extract_strided_slice %7 {offsets = [0, 640], sizes = [8, 128], strides = [1, 1]} : vector<8x768xf32> to vector<8x128xf32>
    %54 = vector.extract_strided_slice %13 {offsets = [0, 256], sizes = [8, 128], strides = [1, 1]} : vector<8x384xf32> to vector<8x128xf32>
    %55 = arith.mulf %52, %54 : vector<8x128xf32>
    %56 = arith.addf %55, %53 : vector<8x128xf32>
    %57 = vector.extract_strided_slice %56 {offsets = [0, 0], sizes = [8, 8], strides = [1, 1]} : vector<8x128xf32> to vector<8x8xf32>
    %c0_34 = arith.constant 0 : index
    %c0_35 = arith.constant 0 : index
    %58 = vector.load %arg6[%c0_34, %c0_35] : memref<8x8xf32, #tpu.memory_space<vmem>>, vector<8x8xf32>
    tpu.vector_store %arg6[%c0_34, %c0_35], %57 {strides = array<i32>} : memref<8x8xf32, #tpu.memory_space<vmem>>, vector<8x8xf32>,
    return
  }
  func.func @transform_0(%arg0: i32) -> (i32, i32) {
    %c0_i32 = arith.constant 0 : i32
    %c0_i32_0 = arith.constant 0 : i32
    return %arg0, %c0_i32 : i32, i32
  }
  func.func @transform_1(%arg0: i32) -> (i32, i32) {
    %c0_i32 = arith.constant 0 : i32
    %c0_i32_0 = arith.constant 0 : i32
    return %arg0, %c0_i32 : i32, i32
  }
  func.func @transform_2(%arg0: i32) -> (i32, i32, i32) {
    %c0_i32 = arith.constant 0 : i32
    %c0_i32_0 = arith.constant 0 : i32
    %c0_i32_1 = arith.constant 0 : i32
    %c0_i32_2 = arith.constant 0 : i32
    return %c0_i32, %c0_i32_0, %c0_i32_1 : i32, i32, i32
  }
  func.func @transform_3(%arg0: i32) -> (i32, i32, i32) {
    %c0_i32 = arith.constant 0 : i32
    %c0_i32_0 = arith.constant 0 : i32
    %c0_i32_1 = arith.constant 0 : i32
    %c0_i32_2 = arith.constant 0 : i32
    return %c0_i32, %c0_i32_0, %c0_i32_1 : i32, i32, i32
  }
  func.func @transform_4(%arg0: i32) -> (i32, i32) {
    %c0_i32 = arith.constant 0 : i32
    %c0_i32_0 = arith.constant 0 : i32
    %c0_i32_1 = arith.constant 0 : i32
    return %c0_i32, %c0_i32_0 : i32, i32
  }
  func.func @transform_5(%arg0: i32) -> (i32, i32) {
    %c0_i32 = arith.constant 0 : i32
    %c0_i32_0 = arith.constant 0 : i32
    return %arg0, %c0_i32 : i32, i32
  }
}

</mosaic_0001>

<llo_original>
// kernel: odenet_forward.1
$region0: #{odenet_forward.1}
  #allocation0 [shape = 'u32[]', space=smem, size = 0x4, offset = 0x4, fixed_abs, tag = 'smem constant byte address 0x4 - core index']
  #allocation1 [shape = 'u32[72,128]{1,0:T(1,128)}', space=vmem, size = 0x9000, scoped, tag = 'internal scratch']
  #allocation2 [shape = 'f32[8,128]{1,0:T(8,128)}', space=vmem, size = 0x1000, scoped, tag = 'scratch operand']
  %s0 = inlined_call_operand.vmem [shape: f32[8,8], index: 0, kind: input, shape index: {}]
  %s1 = inlined_call_operand.vmem [shape: f32[8,8], index: 1, kind: input, shape index: {}]
  %s2 = inlined_call_operand.hbm [shape: f32[3,128,128], index: 2, kind: input, shape index: {}]
  %s3 = inlined_call_operand.vmem [shape: f32[3,1,128], index: 3, kind: input, shape index: {}]
  %s4 = inlined_call_operand.hbm [shape: f32[8,768], index: 4, kind: input, shape index: {}]
  %s5 = inlined_call_operand.hbm [shape: f32[8,8], index: 5, kind: output, shape index: {}]
  %s6 = sld [smem:[#allocation0]]
  $region38: #{odenet_forward.1} parent=0
    _
  %s8 = ssub.s32 1, %s6
  %s9 = scalar_select 0, %s8, %s6
  $region1: #{odenet_forward.1} parent=0
    #allocation3 [shape = 'u8[196608]{0}', space=vmem, size = 0x30000, scoped, tag = 'input window, operand 2, single buffered']
    #allocation4 [shape = 's32[1]{0}', space=sflag, size = 0x4, scoped, tag = 'scoped memory for odenet_forward.1']
    #allocation5 [shape = 's32[1]{0}', space=sflag, size = 0x4, scoped, tag = 'scoped memory for odenet_forward.1']
    #allocation6 [shape = 'u8[24576]{0}', space=vmem, size = 0x6000, scoped, tag = 'input window, operand 4, single buffered']
    #allocation7 [shape = 's32[1]{0}', space=sflag, size = 0x4, scoped, tag = 'scoped memory for odenet_forward.1']
    #allocation8 [shape = 'u8[4096]{0}', space=vmem, size = 0x1000, scoped, tag = 'output window, operand 0, single buffered']
    %10 = vsyncpa [#allocation4], 0
    %11 = vsyncpa [#allocation7], 0
    %12 = vsyncpa [#allocation5], 0
    // Predicated region
    $region2: #{odenet_forward.1} parent=1 // pred_check
      _
    $region3: #{odenet_forward.1} parent=1 // pred_check_branch
      %14 = sbr.rel (0) target = $region5
    $region4: #{odenet_forward.1} parent=1 // pred_region
      _
    $region5: #{odenet_forward.1} parent=1 // pred_fallthru
      _
    // Predicated region
    $region6: #{odenet_forward.1} parent=1 // pred_check
      _
    $region7: #{odenet_forward.1} parent=1 // pred_check_branch
      %16 = sbr.rel (0) target = $region9
    $region8: #{odenet_forward.1} parent=1 // pred_region
      _
    $region9: #{odenet_forward.1} parent=1 // pred_fallthru
      _
    // Predicated region
    $region10: #{odenet_forward.1} parent=1 // pred_check
      _
    $region11: #{odenet_forward.1} parent=1 // pred_check_branch
      %18 = sbr.rel (0) target = $region13
    $region12: #{odenet_forward.1} parent=1 // pred_region
      %20 = vsyncadd [#allocation4], 0
      %s21 = sshll.u32 %s2, 4
      %s22 = int_to_ptr.hbm [resolvable:$true] %s21
      %s23 = sshll.u32 [#allocation3], 4
      %s24 = int_to_ptr.vmem [resolvable:$true] %s23
      %29 = dma.hbm_to_vmem [thread:$0]  %s22, 6144, %s24, [#allocation4], 128, 128, 8
    $region13: #{odenet_forward.1} parent=1 // pred_fallthru
      _
    // Predicated region
    $region14: #{odenet_forward.1} parent=1 // pred_check
      _
    $region15: #{odenet_forward.1} parent=1 // pred_check_branch
      %31 = sbr.rel (0) target = $region17
    $region16: #{odenet_forward.1} parent=1 // pred_region
      _
    $region17: #{odenet_forward.1} parent=1 // pred_fallthru
      _
    // Predicated region
    $region18: #{odenet_forward.1} parent=1 // pred_check
      _
    $region19: #{odenet_forward.1} parent=1 // pred_check_branch
      %33 = sbr.rel (0) target = $region21
    $region20: #{odenet_forward.1} parent=1 // pred_region
      %35 = vsyncadd [#allocation7], 0
      %s37 = sshll.u32 %s4, 4
      %s38 = int_to_ptr.hbm [resolvable:$true] %s37
      %s39 = sshll.u32 [#allocation6], 4
      %s40 = int_to_ptr.vmem [resolvable:$true] %s39
      %42 = dma.hbm_to_vmem [thread:$0]  %s38, 768, %s40, [#allocation7]
    $region21: #{odenet_forward.1} parent=1 // pred_fallthru
      _
    // Predicated region
    $region22: #{odenet_forward.1} parent=1 // pred_check
      _
    $region23: #{odenet_forward.1} parent=1 // pred_check_branch
      %44 = sbr.rel (0) target = $region25
    $region24: #{odenet_forward.1} parent=1 // pred_region
      %46 = dma.done [#allocation4], 6144
    $region25: #{odenet_forward.1} parent=1 // pred_fallthru
      _
    // Predicated region
    $region26: #{odenet_forward.1} parent=1 // pred_check
      _
    $region27: #{odenet_forward.1} parent=1 // pred_check_branch
      %48 = sbr.rel (0) target = $region29
    $region28: #{odenet_forward.1} parent=1 // pred_region
      %50 = dma.done [#allocation7], 768
    $region29: #{odenet_forward.1} parent=1 // pred_fallthru
      _
    %51 = vst [vmem:[#allocation2] sm:$0xff] 0.0
    %v52 = vld [vmem:[%s1] sm:$0xff]
    %vm53 = vcmask 64512
    %54 = vst.msk [vmem:[#allocation2] sm:$0xff] %vm53, %v52
    %v55 = vld [vmem:[#allocation2] sm:$0xff]
    %v56 = vld [vmem:[%s0] sm:$0xff]
    %v57 = vld [vmem:[#allocation6] sm:$0xff]
    %v58 = vld [vmem:[#allocation6 + $0x8] sm:$0xff]
    %v59 = vld [vmem:[#allocation6 + $0x10] sm:$0xff]
    %v60 = vld [vmem:[#allocation6 + $0x18] sm:$0xff]
    %v61 = vld [vmem:[#allocation6 + $0x20] sm:$0xff]
    %v62 = vld [vmem:[#allocation6 + $0x28] sm:$0xff]
    %v64 = vsel %vm53, %v56, 0
    %66 = vmatpush.msra.mxu0 0.0
    %67 = vmatpush.msra.mxu0 0.0
    %68 = vmatpush.msra.mxu0 0.0
    %69 = vmatpush.msra.mxu0 0.0
    %70 = vmatpush.msra.mxu0 0.0
    %71 = vmatpush.msra.mxu0 0.0
    %72 = vmatpush.msra.mxu0 0.0
    %73 = vmatpush.msra.mxu0 0.0
    %74 = vmatpush.msra.mxu0 0.0
    %75 = vmatpush.msra.mxu0 0.0
    %76 = vmatpush.msra.mxu0 0.0
    %77 = vmatpush.msra.mxu0 0.0
    %78 = vmatpush.msra.mxu0 0.0
    %79 = vmatpush.msra.mxu0 0.0
    %80 = vmatpush.msra.mxu0 0.0
    %81 = vmatpush.msra.mxu0 %v57
    %82 = vmatmul.f32.gmra.mxu0 %v64
    %v83 = vpop.f32.mrf.mxu0
    %v84 = vadd.f32 0.0, %v83
    %85 = vdwg.mxu0
    %86 = vmatpush.msra.mxu0 0.0
    %87 = vmatpush.msra.mxu0 0.0
    %88 = vmatpush.msra.mxu0 0.0
    %89 = vmatpush.msra.mxu0 0.0
    %90 = vmatpush.msra.mxu0 0.0
    %91 = vmatpush.msra.mxu0 0.0
    %92 = vmatpush.msra.mxu0 0.0
    %93 = vmatpush.msra.mxu0 0.0
    %94 = vmatpush.msra.mxu0 0.0
    %95 = vmatpush.msra.mxu0 0.0
    %96 = vmatpush.msra.mxu0 0.0
    %97 = vmatpush.msra.mxu0 0.0
    %98 = vmatpush.msra.mxu0 0.0
    %99 = vmatpush.msra.mxu0 0.0
    %100 = vmatpush.msra.mxu0 0.0
    %101 = vmatpush.msra.mxu0 %v58
    %102 = vmatmul.f32.gmra.mxu0 %v64
    %v103 = vpop.f32.mrf.mxu0
    %v104 = vadd.f32 0.0, %v103
    %105 = vdwg.mxu0
    %106 = vmatpush.msra.mxu0 0.0
    %107 = vmatpush.msra.mxu0 0.0
    %108 = vmatpush.msra.mxu0 0.0
    %109 = vmatpush.msra.mxu0 0.0
    %110 = vmatpush.msra.mxu0 0.0
    %111 = vmatpush.msra.mxu0 0.0
    %112 = vmatpush.msra.mxu0 0.0
    %113 = vmatpush.msra.mxu0 0.0
    %114 = vmatpush.msra.mxu0 0.0
    %115 = vmatpush.msra.mxu0 0.0
    %116 = vmatpush.msra.mxu0 0.0
    %117 = vmatpush.msra.mxu0 0.0
    %118 = vmatpush.msra.mxu0 0.0
    %119 = vmatpush.msra.mxu0 0.0
    %120 = vmatpush.msra.mxu0 0.0
    %121 = vmatpush.msra.mxu0 %v59
    %122 = vmatmul.f32.gmra.mxu0 %v64
    %v123 = vpop.f32.mrf.mxu0
    %v124 = vadd.f32 0.0, %v123
    %125 = vdwg.mxu0
    %126 = vmatpush.msra.mxu0 0.0
    %127 = vmatpush.msra.mxu0 0.0
    %128 = vmatpush.msra.mxu0 0.0
    %129 = vmatpush.msra.mxu0 0.0
    %130 = vmatpush.msra.mxu0 0.0
    %131 = vmatpush.msra.mxu0 0.0
    %132 = vmatpush.msra.mxu0 0.0
    %133 = vmatpush.msra.mxu0 0.0
    %134 = vmatpush.msra.mxu0 0.0
    %135 = vmatpush.msra.mxu0 0.0
    %136 = vmatpush.msra.mxu0 0.0
    %137 = vmatpush.msra.mxu0 0.0
    %138 = vmatpush.msra.mxu0 0.0
    %139 = vmatpush.msra.mxu0 0.0
    %140 = vmatpush.msra.mxu0 0.0
    %141 = vmatpush.msra.mxu0 %v60
    %142 = vmatmul.f32.gmra.mxu0 %v64
    %v143 = vpop.f32.mrf.mxu0
    %v144 = vadd.f32 0.0, %v143
    %145 = vdwg.mxu0
    %146 = vmatpush.msra.mxu0 0.0
    %147 = vmatpush.msra.mxu0 0.0
    %148 = vmatpush.msra.mxu0 0.0
    %149 = vmatpush.msra.mxu0 0.0
    %150 = vmatpush.msra.mxu0 0.0
    %151 = vmatpush.msra.mxu0 0.0
    %152 = vmatpush.msra.mxu0 0.0
    %153 = vmatpush.msra.mxu0 0.0
    %154 = vmatpush.msra.mxu0 0.0
    %155 = vmatpush.msra.mxu0 0.0
    %156 = vmatpush.msra.mxu0 0.0
    %157 = vmatpush.msra.mxu0 0.0
    %158 = vmatpush.msra.mxu0 0.0
    %159 = vmatpush.msra.mxu0 0.0
    %160 = vmatpush.msra.mxu0 0.0
    %161 = vmatpush.msra.mxu0 %v61
    %162 = vmatmul.f32.gmra.mxu0 %v64
    %v163 = vpop.f32.mrf.mxu0
    %v164 = vadd.f32 0.0, %v163
    %165 = vdwg.mxu0
    %166 = vmatpush.msra.mxu0 0.0
    %167 = vmatpush.msra.mxu0 0.0
    %168 = vmatpush.msra.mxu0 0.0
    %169 = vmatpush.msra.mxu0 0.0
    %170 = vmatpush.msra.mxu0 0.0
    %171 = vmatpush.msra.mxu0 0.0
    %172 = vmatpush.msra.mxu0 0.0
    %173 = vmatpush.msra.mxu0 0.0
    %174 = vmatpush.msra.mxu0 0.0
    %175 = vmatpush.msra.mxu0 0.0
    %176 = vmatpush.msra.mxu0 0.0
    %177 = vmatpush.msra.mxu0 0.0
    %178 = vmatpush.msra.mxu0 0.0
    %179 = vmatpush.msra.mxu0 0.0
    %180 = vmatpush.msra.mxu0 0.0
    %181 = vmatpush.msra.mxu0 %v62
    %182 = vmatmul.f32.gmra.mxu0 %v64
    %v183 = vpop.f32.mrf.mxu0
    %v184 = vadd.f32 0.0, %v183
    %185 = vdwg.mxu0
    %v186 = vxor.u32 %v84, 2147483648
    %v187 = vxor.u32 %v104, 2147483648
    %v188 = vxor.u32 %v124, 2147483648
    %v189 = vmul.f32 %v186, 1.442695
    %v190 = vpow.pop %v189
    %v191 = vmul.f32 %v187, 1.442695
    %v192 = vpow.pop %v191
    %v193 = vmul.f32 %v188, 1.442695
    %v194 = vpow.pop %v193
    %v195 = vadd.f32 %v190, 1.0
    %v196 = vadd.f32 %v192, 1.0
    %v197 = vadd.f32 %v194, 1.0
    %v198 = vrcp.pop %v195
    %v199 = vmul.f32 %v195, %v198
    %v200 = vsub.f32 1.0, %v199
    %v201 = vmul.f32 %v198, %v200
    %v202 = vadd.f32 %v198, %v201
    %vm203 = vweird.f32 %v195
    %vm204 = vweird.f32 %v198
    %vm205 = vmor %vm203, %vm204
    %v206 = vsel %vm205, %v198, %v202
    %v207 = vand.u32 2147483647, %v195
    %vm208 = vcmp.eq.f32.partialorder %v207, 8.507059e+37
    %v209 = vand.u32 %v195, 2147483648
    %v210 = vor.u32 1.1754944e-38, %v209
    %v211 = vsel %vm208, %v210, %v206
    %v212 = vmul.f32 1.0, %v211
    %v213 = vrcp.pop %v196
    %v214 = vmul.f32 %v196, %v213
    %v215 = vsub.f32 1.0, %v214
    %v216 = vmul.f32 %v213, %v215
    %v217 = vadd.f32 %v213, %v216
    %vm218 = vweird.f32 %v196
    %vm219 = vweird.f32 %v213
    %vm220 = vmor %vm218, %vm219
    %v221 = vsel %vm220, %v213, %v217
    %v222 = vand.u32 2147483647, %v196
    %vm223 = vcmp.eq.f32.partialorder %v222, 8.507059e+37
    %v224 = vand.u32 %v196, 2147483648
    %v225 = vor.u32 1.1754944e-38, %v224
    %v226 = vsel %vm223, %v225, %v221
    %v227 = vmul.f32 1.0, %v226
    %v228 = vrcp.pop %v197
    %v229 = vmul.f32 %v197, %v228
    %v230 = vsub.f32 1.0, %v229
    %v231 = vmul.f32 %v228, %v230
    %v232 = vadd.f32 %v228, %v231
    %vm233 = vweird.f32 %v197
    %vm234 = vweird.f32 %v228
    %vm235 = vmor %vm233, %vm234
    %v236 = vsel %vm235, %v228, %v232
    %v237 = vand.u32 2147483647, %v197
    %vm238 = vcmp.eq.f32.partialorder %v237, 8.507059e+37
    %v239 = vand.u32 %v197, 2147483648
    %v240 = vor.u32 1.1754944e-38, %v239
    %v241 = vsel %vm238, %v240, %v236
    %v242 = vmul.f32 1.0, %v241
    %v243 = vld [vmem:[#allocation3] sm:$0xff]
    %v244 = vld [vmem:[#allocation3 + $0x8] sm:$0xff]
    %v245 = vld [vmem:[#allocation3 + $0x10] sm:$0xff]
    %v246 = vld [vmem:[#allocation3 + $0x18] sm:$0xff]
    %v247 = vld [vmem:[#allocation3 + $0x20] sm:$0xff]
    %v248 = vld [vmem:[#allocation3 + $0x28] sm:$0xff]
    %v249 = vld [vmem:[#allocation3 + $0x30] sm:$0xff]
    %v250 = vld [vmem:[#allocation3 + $0x38] sm:$0xff]
    %v251 = vld [vmem:[#allocation3 + $0x40] sm:$0xff]
    %v252 = vld [vmem:[#allocation3 + $0x48] sm:$0xff]
    %v253 = vld [vmem:[#allocation3 + $0x50] sm:$0xff]
    %v254 = vld [vmem:[#allocation3 + $0x58] sm:$0xff]
    %v255 = vld [vmem:[#allocation3 + $0x60] sm:$0xff]
    %v256 = vld [vmem:[#allocation3 + $0x68] sm:$0xff]
    %v257 = vld [vmem:[#allocation3 + $0x70] sm:$0xff]
    %v258 = vld [vmem:[#allocation3 + $0x78] sm:$0xff]
    %v259 = vld [vmem:[%s3] sm:$0x1]
    %v261 = vperm.slane %v259, 0
    %263 = vmatpush.msra.mxu0 %v258
    %264 = vmatpush.msra.mxu0 %v257
    %265 = vmatpush.msra.mxu0 %v256
    %266 = vmatpush.msra.mxu0 %v255
    %267 = vmatpush.msra.mxu0 %v254
    %268 = vmatpush.msra.mxu0 %v253
    %269 = vmatpush.msra.mxu0 %v252
    %270 = vmatpush.msra.mxu0 %v251
    %271 = vmatpush.msra.mxu0 %v250
    %272 = vmatpush.msra.mxu0 %v249
    %273 = vmatpush.msra.mxu0 %v248
    %274 = vmatpush.msra.mxu0 %v247
    %275 = vmatpush.msra.mxu0 %v246
    %276 = vmatpush.msra.mxu0 %v245
    %277 = vmatpush.msra.mxu0 %v244
    %278 = vmatpush.msra.mxu0 %v243
    %279 = vmatmul.f32.gmra.mxu0 %v55
    %v280 = vpop.f32.mrf.mxu0
    %v281 = vadd.f32 %v261, %v280
    %282 = vdwg.mxu0
    %v283 = vmul.f32 %v281, %v212
    %v284 = vadd.f32 %v283, %v144
    %vm285 = vcmp.gt.f32.partialorder %v284, 20.0
    %v286 = vmul.f32 %v284, 1.442695
    %v287 = vpow.pop %v286
    %v288 = vadd.f32 %v287, 1.0
    %v289 = vlog2.pop %v288
    %v290 = vmul.f32 %v289, 0.6931472
    %v291 = vmul.f32 -0.5, %v287
    %v292 = vadd.f32 %v291, 1.0
    %v293 = vmul.f32 %v292, %v287
    %v294 = vand.u32 2147483647, %v287
    %vm295 = vcmp.lt.f32.partialorder %v294, 0.0004427343
    %v296 = vsel %vm295, %v293, %v290
    %v297 = vsel %vm285, %v284, %v296
    %s298 = scalar_lea.vmem [#allocation3], 128
    %v299 = vld [vmem:[%s298] sm:$0xff]
    %v300 = vld [vmem:[%s298 + $0x8] sm:$0xff]
    %v301 = vld [vmem:[%s298 + $0x10] sm:$0xff]
    %v302 = vld [vmem:[%s298 + $0x18] sm:$0xff]
    %v303 = vld [vmem:[%s298 + $0x20] sm:$0xff]
    %v304 = vld [vmem:[%s298 + $0x28] sm:$0xff]
    %v305 = vld [vmem:[%s298 + $0x30] sm:$0xff]
    %v306 = vld [vmem:[%s298 + $0x38] sm:$0xff]
    %v307 = vld [vmem:[%s298 + $0x40] sm:$0xff]
    %v308 = vld [vmem:[%s298 + $0x48] sm:$0xff]
    %v309 = vld [vmem:[%s298 + $0x50] sm:$0xff]
    %v310 = vld [vmem:[%s298 + $0x58] sm:$0xff]
    %v311 = vld [vmem:[%s298 + $0x60] sm:$0xff]
    %v312 = vld [vmem:[%s298 + $0x68] sm:$0xff]
    %v313 = vld [vmem:[%s298 + $0x70] sm:$0xff]
    %v314 = vld [vmem:[%s298 + $0x78] sm:$0xff]
    %s315 = scalar_lea.vmem %s3, 1
    %v316 = vld [vmem:[%s315] sm:$0x1]
    %v318 = vperm.slane %v316, 0
    %320 = vmatpush.msra.mxu0 %v314
    %321 = vmatpush.msra.mxu0 %v313
    %322 = vmatpush.msra.mxu0 %v312
    %323 = vmatpush.msra.mxu0 %v311
    %324 = vmatpush.msra.mxu0 %v310
    %325 = vmatpush.msra.mxu0 %v309
    %326 = vmatpush.msra.mxu0 %v308
    %327 = vmatpush.msra.mxu0 %v307
    %328 = vmatpush.msra.mxu0 %v306
    %329 = vmatpush.msra.mxu0 %v305
    %330 = vmatpush.msra.mxu0 %v304
    %331 = vmatpush.msra.mxu0 %v303
    %332 = vmatpush.msra.mxu0 %v302
    %333 = vmatpush.msra.mxu0 %v301
    %334 = vmatpush.msra.mxu0 %v300
    %335 = vmatpush.msra.mxu0 %v299
    %336 = vmatmul.f32.gmra.mxu0 %v297
    %v337 = vpop.f32.mrf.mxu0
    %v338 = vadd.f32 %v318, %v337
    %339 = vdwg.mxu0
    %v340 = vmul.f32 %v338, %v227
    %v341 = vadd.f32 %v340, %v164
    %vm342 = vcmp.gt.f32.partialorder %v341, 20.0
    %v343 = vmul.f32 %v341, 1.442695
    %v344 = vpow.pop %v343
    %v345 = vadd.f32 %v344, 1.0
    %v346 = vlog2.pop %v345
    %v347 = vmul.f32 %v346, 0.6931472
    %v348 = vmul.f32 -0.5, %v344
    %v349 = vadd.f32 %v348, 1.0
    %v350 = vmul.f32 %v349, %v344
    %v351 = vand.u32 2147483647, %v344
    %vm352 = vcmp.lt.f32.partialorder %v351, 0.0004427343
    %v353 = vsel %vm352, %v350, %v347
    %v354 = vsel %vm342, %v341, %v353
    %s355 = scalar_lea.vmem [#allocation3], 256
    %v356 = vld [vmem:[%s355] sm:$0xff]
    %v357 = vld [vmem:[%s355 + $0x8] sm:$0xff]
    %v358 = vld [vmem:[%s355 + $0x10] sm:$0xff]
    %v359 = vld [vmem:[%s355 + $0x18] sm:$0xff]
    %v360 = vld [vmem:[%s355 + $0x20] sm:$0xff]
    %v361 = vld [vmem:[%s355 + $0x28] sm:$0xff]
    %v362 = vld [vmem:[%s355 + $0x30] sm:$0xff]
    %v363 = vld [vmem:[%s355 + $0x38] sm:$0xff]
    %v364 = vld [vmem:[%s355 + $0x40] sm:$0xff]
    %v365 = vld [vmem:[%s355 + $0x48] sm:$0xff]
    %v366 = vld [vmem:[%s355 + $0x50] sm:$0xff]
    %v367 = vld [vmem:[%s355 + $0x58] sm:$0xff]
    %v368 = vld [vmem:[%s355 + $0x60] sm:$0xff]
    %v369 = vld [vmem:[%s355 + $0x68] sm:$0xff]
    %v370 = vld [vmem:[%s355 + $0x70] sm:$0xff]
    %v371 = vld [vmem:[%s355 + $0x78] sm:$0xff]
    %s372 = scalar_lea.vmem %s3, 2
    %v373 = vld [vmem:[%s372] sm:$0x1]
    %v375 = vperm.slane %v373, 0
    %377 = vmatpush.msra.mxu0 %v371
    %378 = vmatpush.msra.mxu0 %v370
    %379 = vmatpush.msra.mxu0 %v369
    %380 = vmatpush.msra.mxu0 %v368
    %381 = vmatpush.msra.mxu0 %v367
    %382 = vmatpush.msra.mxu0 %v366
    %383 = vmatpush.msra.mxu0 %v365
    %384 = vmatpush.msra.mxu0 %v364
    %385 = vmatpush.msra.mxu0 %v363
    %386 = vmatpush.msra.mxu0 %v362
    %387 = vmatpush.msra.mxu0 %v361
    %388 = vmatpush.msra.mxu0 %v360
    %389 = vmatpush.msra.mxu0 %v359
    %390 = vmatpush.msra.mxu0 %v358
    %391 = vmatpush.msra.mxu0 %v357
    %392 = vmatpush.msra.mxu0 %v356
    %393 = vmatmul.f32.gmra.mxu0 %v354
    %v394 = vpop.f32.mrf.mxu0
    %v395 = vadd.f32 %v375, %v394
    %396 = vdwg.mxu0
    %v397 = vmul.f32 %v395, %v242
    %v398 = vadd.f32 %v397, %v184
    %399 = vst.msk [vmem:[#allocation8] sm:$0xff] %vm53, %v398
    // Predicated region
    $region30: #{odenet_forward.1} parent=1 // pred_check
      _
    $region31: #{odenet_forward.1} parent=1 // pred_check_branch
      %401 = sbr.rel (0) target = $region33
    $region32: #{odenet_forward.1} parent=1 // pred_region
      %403 = vsyncadd [#allocation5], 0
      %s405 = sshll.u32 [#allocation8], 4
      %s406 = int_to_ptr.vmem [resolvable:$true] %s405
      %s407 = sshll.u32 %s5, 4
      %s408 = int_to_ptr.hbm [resolvable:$true] %s407
      %410 = dma.vmem_to_hbm [thread:$0]  %s406, 128, %s408, [#allocation5]
    $region33: #{odenet_forward.1} parent=1 // pred_fallthru
      _
    // Predicated region
    $region34: #{odenet_forward.1} parent=1 // pred_check
      _
    $region35: #{odenet_forward.1} parent=1 // pred_check_branch
      %412 = sbr.rel (0) target = $region37
    $region36: #{odenet_forward.1} parent=1 // pred_region
      %414 = dma.done [#allocation5], 128
    $region37: #{odenet_forward.1} parent=1 // pred_fallthru
      _
    %415 = vsyncpa [#allocation4], 1
    %416 = vsyncpa [#allocation7], 1
    %417 = vsyncpa [#allocation5], 1

</llo_original>
